<compile_context>
chip_gen: v5e
topology: v5e:2x2
jax: 0.10.0
libtpu: 0.0.40
codegen_flags: <defaults>
</compile_context>

<pallas_src>
import functools

import jax
import jax.numpy as jnp
from jax.experimental import pallas as pl
from jax.experimental.pallas import tpu as pltpu


def _round_up(x, m):
    return (x + m - 1) // m * m


def _classblock_kernel(x_ref, w_ref, b_ref, o_ref, *, slope, apply_relu):
    """Fused LeakyReLU -> (x @ W) + b for one (tm, tn) output tile.

    x_ref: (tm, K)  activation tile (full K, no reduction grid)
    w_ref: (K, tn)  packed weight tile (bf16, (in, out) layout)
    b_ref: (1, tn)  bias tile (f32)
    o_ref: (tm, tn) output tile
    """
    x = x_ref[...]
    if apply_relu:
        x = jnp.where(x >= 0.0, x, slope * x)      # LeakyReLU(negative_slope)
    # Dropout(p) is identity at inference time.
    x = x.astype(w_ref.dtype)                      # bf16 into the MXU
    y = jnp.dot(x, w_ref[...], preferred_element_type=jnp.float32)
    o_ref[...] = (y + b_ref[...]).astype(o_ref.dtype)


def prepare_class_block_params(weight, bias, *, weight_dtype=jnp.bfloat16):
    """One-time packing of nn.Linear params (call once at init, not per step).

    weight: (class_num, input_dim)  PyTorch nn.Linear layout
    bias:   (class_num,)
    returns (w_packed (K, Np) weight_dtype, b_packed (1, Np) f32)
    """
    n, k = weight.shape
    np_ = _round_up(n, 128)                        # lane-dense output width
    w_packed = jnp.pad(weight.astype(weight_dtype).T, ((0, 0), (0, np_ - n)))
    b_packed = jnp.pad(bias.astype(jnp.float32), (0, np_ - n)).reshape(1, np_)
    return w_packed, b_packed


def class_block_forward(x, w_packed, b_packed, class_num, *,
                        negative_slope=0.1, relu=True, out_dtype=None):
    """ClassBlock forward. x: (..., input_dim) -> (..., class_num)."""
    orig_shape = x.shape
    K = orig_shape[-1]
    x2 = x.reshape(-1, K)
    M = x2.shape[0]
    Kw, Np = w_packed.shape
    assert Kw == K, (Kw, K)
    out_dtype = out_dtype or x.dtype

    xb = x2.dtype.itemsize
    wb = w_packed.dtype.itemsize
    ob = jnp.dtype(out_dtype).itemsize

    # ---- tile selection -----------------------------------------------------
    # N tile: 128-multiple divisor of Np (no re-rounding of Np), capped at 256.
    tn = 256 if (Np % 256 == 0) else 128
    # M tile: full M when small (block dim == array dim is always legal),
    # otherwise 256 rows with a ragged last block (no jnp.pad of x).
    TM_MAX = 256
    tm = M if M <= TM_MAX else TM_MAX

    def block_bytes(tm_, tn_):                    # double-buffered block bytes
        return 2 * (tm_ * K * xb + K * tn_ * wb + tn_ * 4 + tm_ * tn_ * ob)

    VMEM_BUDGET = 24 * 1024 * 1024
    while block_bytes(tm, tn) > VMEM_BUDGET and tm > 16:
        tm = max(16, _round_up(tm // 2, 16))      # keep sublane-aligned tiles
    if block_bytes(tm, tn) > VMEM_BUDGET and tn > 128:
        tn = 128

    grid_m = pl.cdiv(M, tm)
    grid_n = Np // tn
    vmem_limit = int(min(max(2 * block_bytes(tm, tn), 32 * 1024 * 1024),
                         56 * 1024 * 1024))

    kern = functools.partial(_classblock_kernel, slope=negative_slope,
                             apply_relu=relu)

    # Keep the larger operand resident across the inner grid axis.
    weight_resident = Np >= M
    if weight_resident:
        # M innermost -> weight block index constant -> W fetched once / N tile
        grid = (grid_n, grid_m)
        in_specs = [
            pl.BlockSpec((tm, K), lambda j, i: (i, 0)),
            pl.BlockSpec((K, tn), lambda j, i: (0, j)),
            pl.BlockSpec((1, tn), lambda j, i: (0, j)),
        ]
        out_spec = pl.BlockSpec((tm, tn), lambda j, i: (i, j))
    else:
        # N innermost -> activation tile stays resident
        grid = (grid_m, grid_n)
        in_specs = [
            pl.BlockSpec((tm, K), lambda i, j: (i, 0)),
            pl.BlockSpec((K, tn), lambda i, j: (0, j)),
            pl.BlockSpec((1, tn), lambda i, j: (0, j)),
        ]
        out_spec = pl.BlockSpec((tm, tn), lambda i, j: (i, j))

    out = pl.pallas_call(
        kern,
        out_shape=jax.ShapeDtypeStruct((M, Np), out_dtype),
        grid=grid,
        in_specs=in_specs,
        out_specs=out_spec,
        compiler_params=pltpu.CompilerParams(
            dimension_semantics=("parallel", "parallel"),
            vmem_limit_bytes=vmem_limit),
    )(x2, w_packed, b_packed)

    out = out[:, :class_num]
    return out.reshape(orig_shape[:-1] + (class_num,))


if __name__ == "__main__":
    key = jax.random.PRNGKey(0)
    kx, kw = jax.random.split(key)

    batch, input_dim, class_num = 8, 256, 100
    x = jax.random.normal(kx, (batch, input_dim), jnp.float32)
    # weights_init_classifier: Linear weight ~ N(0, 0.001), bias = 0
    weight = jax.random.normal(kw, (class_num, input_dim), jnp.float32) * 0.001
    bias = jnp.zeros((class_num,), jnp.float32)

    # one-time param packing (transpose + bf16 cast + lane padding)
    w_packed, b_packed = prepare_class_block_params(weight, bias)

    fwd = jax.jit(lambda xin: class_block_forward(
        xin, w_packed, b_packed, class_num, negative_slope=0.1, relu=True))
    out = jax.block_until_ready(fwd(x))

    # pure-JAX references (eval-mode Dropout = identity)
    x_act = jnp.where(x >= 0, x, 0.1 * x)
    ref_f32 = x_act @ weight.T + bias
    # bf16-matched reference (kernel feeds bf16 operands to the MXU)
    x_bf = x_act.astype(jnp.bfloat16).astype(jnp.float32)
    w_bf = weight.astype(jnp.bfloat16).astype(jnp.float32)
    ref_bf16 = x_bf @ w_bf.T + bias

    assert out.shape == (batch, class_num), out.shape
    assert bool(jnp.all(jnp.isfinite(out)))
    assert bool(jnp.allclose(out, ref_bf16, atol=1e-4, rtol=1e-2)), \
        float(jnp.max(jnp.abs(out - ref_bf16)))
    assert bool(jnp.allclose(out, ref_f32, atol=2e-3, rtol=5e-2)), \
        float(jnp.max(jnp.abs(out - ref_f32)))
    print("KERNEL_OK")
</pallas_src>

<mosaic_0001>
module attributes {stable_mosaic.version = 11 : i64} {
  func.func @_classblock_kernel(%arg0: i32, %arg1: i32, %arg2: memref<8x256xf32, #tpu.memory_space<vmem>>, %arg3: memref<256x128xbf16, #tpu.memory_space<vmem>>, %arg4: memref<1x128xf32, #tpu.memory_space<vmem>>, %arg5: memref<8x128xf32, #tpu.memory_space<vmem>>) attributes {dimension_semantics = [#tpu.dimension_semantics<parallel>, #tpu.dimension_semantics<parallel>], iteration_bounds = array<i64: 1, 1>, scalar_prefetch = 0 : i64, scratch_operands = 0 : i64, tpu.core_type = #tpu.core_type<tc>, window_params = [{transform_indices = @transform_0, window_bounds = array<i64: 8, 256>}, {transform_indices = @transform_1, window_bounds = array<i64: 256, 128>}, {transform_indices = @transform_2, window_bounds = array<i64: 1, 128>}, {transform_indices = @transform_3, window_bounds = array<i64: 8, 128>}]} {
    %c0 = arith.constant 0 : index
    %c0_0 = arith.constant 0 : index
    %0 = vector.load %arg2[%c0, %c0_0] : memref<8x256xf32, #tpu.memory_space<vmem>>, vector<8x256xf32>
    %cst = arith.constant 0.000000e+00 : f32
    %1 = vector.broadcast %cst : f32 to vector<8x256xf32>
    %2 = arith.cmpf oge, %0, %1 : vector<8x256xf32>
    %cst_1 = arith.constant 1.000000e-01 : f32
    %3 = vector.broadcast %cst_1 : f32 to vector<8x256xf32>
    %4 = arith.mulf %3, %0 : vector<8x256xf32>
    %5 = arith.select %2, %0, %4 : vector<8x256xi1>, vector<8x256xf32>
    %6 = arith.truncf %5 : vector<8x256xf32> to vector<8x256xbf16>
    %c0_2 = arith.constant 0 : index
    %c0_3 = arith.constant 0 : index
    %7 = vector.load %arg3[%c0_2, %c0_3] : memref<256x128xbf16, #tpu.memory_space<vmem>>, vector<256x128xbf16>
    %cst_4 = arith.constant dense<0.000000e+00> : vector<8x128xf32>
    %8 = tpu.matmul %6, %7, %cst_4 {dimension_numbers = #tpu.dot_dimension_numbers<[1], [0], [0], [1], [0, 0, 1, 1], [], []>} : vector<8x256xbf16>, vector<256x128xbf16>, vector<8x128xf32> -> vector<8x128xf32>
    %c0_5 = arith.constant 0 : index
    %c0_6 = arith.constant 0 : index
    %9 = vector.load %arg4[%c0_5, %c0_6] : memref<1x128xf32, #tpu.memory_space<vmem>>, vector<1x128xf32>
    %10 = vector.broadcast %9 : vector<1x128xf32> to vector<8x128xf32>
    %11 = arith.addf %8, %10 : vector<8x128xf32>
    %c0_7 = arith.constant 0 : index
    %c0_8 = arith.constant 0 : index
    %12 = vector.load %arg5[%c0_7, %c0_8] : memref<8x128xf32, #tpu.memory_space<vmem>>, vector<8x128xf32>
    tpu.vector_store %arg5[%c0_7, %c0_8], %11 {strides = array<i32>} : memref<8x128xf32, #tpu.memory_space<vmem>>, vector<8x128xf32>,
    return
  }
  func.func @transform_0(%arg0: i32, %arg1: i32) -> (i32, i32) {
    %c0_i32 = arith.constant 0 : i32
    %c0_i32_0 = arith.constant 0 : i32
    return %arg1, %c0_i32 : i32, i32
  }
  func.func @transform_1(%arg0: i32, %arg1: i32) -> (i32, i32) {
    %c0_i32 = arith.constant 0 : i32
    %c0_i32_0 = arith.constant 0 : i32
    return %c0_i32, %arg0 : i32, i32
  }
  func.func @transform_2(%arg0: i32, %arg1: i32) -> (i32, i32) {
    %c0_i32 = arith.constant 0 : i32
    %c0_i32_0 = arith.constant 0 : i32
    return %c0_i32, %arg0 : i32, i32
  }
  func.func @transform_3(%arg0: i32, %arg1: i32) -> (i32, i32) {
    %c0_i32 = arith.constant 0 : i32
    return %arg1, %arg0 : i32, i32
  }
}

</mosaic_0001>

<llo_original>
// kernel: _lambda_.1
$region0: #{_lambda_.1}
  #allocation0 [shape = 'u32[]', space=smem, size = 0x4, offset = 0x4, fixed_abs, tag = 'smem constant byte address 0x4 - core index']
  #allocation1 [shape = 'u32[72,128]{1,0:T(1,128)}', space=vmem, size = 0x9000, scoped, tag = 'internal scratch']
  %s0 = inlined_call_operand.hbm [shape: f32[8,256], index: 0, kind: input, shape index: {}]
  %s1 = inlined_call_operand.hbm [shape: bf16[256,128], index: 1, kind: input, shape index: {}]
  %s2 = inlined_call_operand.vmem [shape: f32[1,128], index: 2, kind: input, shape index: {}]
  %s3 = inlined_call_operand.hbm [shape: f32[8,128], index: 3, kind: output, shape index: {}]
  %s4 = sld [smem:[#allocation0]]
  $region30: #{_lambda_.1} parent=0
    _
  %s6 = ssub.s32 1, %s4
  %s7 = scalar_select 0, %s6, %s4
  $region1: #{_lambda_.1} parent=0
    #allocation2 [shape = 'u8[8192]{0}', space=vmem, size = 0x2000, scoped, tag = 'input window, operand 0, single buffered']
    #allocation3 [shape = 's32[1]{0}', space=sflag, size = 0x4, scoped, tag = 'scoped memory for _lambda_.1']
    #allocation4 [shape = 's32[1]{0}', space=sflag, size = 0x4, scoped, tag = 'scoped memory for _lambda_.1']
    #allocation5 [shape = 'u8[65536]{0}', space=vmem, size = 0x10000, scoped, tag = 'input window, operand 1, single buffered']
    #allocation6 [shape = 's32[1]{0}', space=sflag, size = 0x4, scoped, tag = 'scoped memory for _lambda_.1']
    #allocation7 [shape = 'u8[4096]{0}', space=vmem, size = 0x1000, scoped, tag = 'output window, operand 0, single buffered']
    %8 = vsyncpa [#allocation3], 0
    %9 = vsyncpa [#allocation6], 0
    %10 = vsyncpa [#allocation4], 0
    // Predicated region
    $region2: #{_lambda_.1} parent=1 // pred_check
      _
    $region3: #{_lambda_.1} parent=1 // pred_check_branch
      %12 = sbr.rel (0) target = $region5
    $region4: #{_lambda_.1} parent=1 // pred_region
      %14 = vsyncadd [#allocation3], 0
      %s16 = sshll.u32 %s0, 4
      %s17 = int_to_ptr.hbm [resolvable:$true] %s16
      %s18 = sshll.u32 [#allocation2], 4
      %s19 = int_to_ptr.vmem [resolvable:$true] %s18
      %21 = dma.hbm_to_vmem [thread:$0]  %s17, 256, %s19, [#allocation3]
    $region5: #{_lambda_.1} parent=1 // pred_fallthru
      _
    // Predicated region
    $region6: #{_lambda_.1} parent=1 // pred_check
      _
    $region7: #{_lambda_.1} parent=1 // pred_check_branch
      %23 = sbr.rel (0) target = $region9
    $region8: #{_lambda_.1} parent=1 // pred_region
      %25 = vsyncadd [#allocation6], 0
      %s26 = sshll.u32 %s1, 4
      %s27 = int_to_ptr.hbm [resolvable:$true] %s26
      %s28 = sshll.u32 [#allocation5], 4
      %s29 = int_to_ptr.vmem [resolvable:$true] %s28
      %34 = dma.hbm_to_vmem [thread:$0]  %s27, 2048, %s29, [#allocation6], 64, 64, 4
    $region9: #{_lambda_.1} parent=1 // pred_fallthru
      _
    // Predicated region
    $region10: #{_lambda_.1} parent=1 // pred_check
      _
    $region11: #{_lambda_.1} parent=1 // pred_check_branch
      %36 = sbr.rel (0) target = $region13
    $region12: #{_lambda_.1} parent=1 // pred_region
      _
    $region13: #{_lambda_.1} parent=1 // pred_fallthru
      _
    // Predicated region
    $region14: #{_lambda_.1} parent=1 // pred_check
      _
    $region15: #{_lambda_.1} parent=1 // pred_check_branch
      %38 = sbr.rel (0) target = $region17
    $region16: #{_lambda_.1} parent=1 // pred_region
      %40 = dma.done [#allocation3], 256
    $region17: #{_lambda_.1} parent=1 // pred_fallthru
      _
    // Predicated region
    $region18: #{_lambda_.1} parent=1 // pred_check
      _
    $region19: #{_lambda_.1} parent=1 // pred_check_branch
      %42 = sbr.rel (0) target = $region21
    $region20: #{_lambda_.1} parent=1 // pred_region
      %44 = dma.done [#allocation6], 2048
    $region21: #{_lambda_.1} parent=1 // pred_fallthru
      _
    %v45 = vld [vmem:[#allocation2] sm:$0xff]
    %v46 = vld [vmem:[#allocation2 + $0x8] sm:$0xff]
    %vm47 = vcmp.ge.f32.partialorder %v45, 0.0
    %vm48 = vcmp.ge.f32.partialorder %v46, 0.0
    %v49 = vmul.f32 %v45, 0.1
    %v50 = vmul.f32 %v46, 0.1
    %v51 = vsel %vm47, %v45, %v49
    %v52 = vsel %vm48, %v46, %v50
    %v53 = vpack.c.bf16 %v51, %v51
    %v54 = vpack.c.bf16 %v52, %v52
    %v55 = vld [vmem:[#allocation5] sm:$0xf]
    %v56 = vld [vmem:[#allocation5 + $0x4] sm:$0xf]
    %v57 = vld [vmem:[#allocation5 + $0x8] sm:$0xf]
    %v58 = vld [vmem:[#allocation5 + $0xc] sm:$0xf]
    %v59 = vld [vmem:[#allocation5 + $0x10] sm:$0xf]
    %v60 = vld [vmem:[#allocation5 + $0x14] sm:$0xf]
    %v61 = vld [vmem:[#allocation5 + $0x18] sm:$0xf]
    %v62 = vld [vmem:[#allocation5 + $0x1c] sm:$0xf]
    %v63 = vld [vmem:[#allocation5 + $0x20] sm:$0xf]
    %v64 = vld [vmem:[#allocation5 + $0x24] sm:$0xf]
    %v65 = vld [vmem:[#allocation5 + $0x28] sm:$0xf]
    %v66 = vld [vmem:[#allocation5 + $0x2c] sm:$0xf]
    %v67 = vld [vmem:[#allocation5 + $0x30] sm:$0xf]
    %v68 = vld [vmem:[#allocation5 + $0x34] sm:$0xf]
    %v69 = vld [vmem:[#allocation5 + $0x38] sm:$0xf]
    %v70 = vld [vmem:[#allocation5 + $0x3c] sm:$0xf]
    %v71 = vld [vmem:[#allocation5 + $0x40] sm:$0xf]
    %v72 = vld [vmem:[#allocation5 + $0x44] sm:$0xf]
    %v73 = vld [vmem:[#allocation5 + $0x48] sm:$0xf]
    %v74 = vld [vmem:[#allocation5 + $0x4c] sm:$0xf]
    %v75 = vld [vmem:[#allocation5 + $0x50] sm:$0xf]
    %v76 = vld [vmem:[#allocation5 + $0x54] sm:$0xf]
    %v77 = vld [vmem:[#allocation5 + $0x58] sm:$0xf]
    %v78 = vld [vmem:[#allocation5 + $0x5c] sm:$0xf]
    %v79 = vld [vmem:[#allocation5 + $0x60] sm:$0xf]
    %v80 = vld [vmem:[#allocation5 + $0x64] sm:$0xf]
    %v81 = vld [vmem:[#allocation5 + $0x68] sm:$0xf]
    %v82 = vld [vmem:[#allocation5 + $0x6c] sm:$0xf]
    %v83 = vld [vmem:[#allocation5 + $0x70] sm:$0xf]
    %v84 = vld [vmem:[#allocation5 + $0x74] sm:$0xf]
    %v85 = vld [vmem:[#allocation5 + $0x78] sm:$0xf]
    %v86 = vld [vmem:[#allocation5 + $0x7c] sm:$0xf]
    %v87 = vld [vmem:[%s2] sm:$0x1]
    %v89 = vperm.slane %v87, 0
    %v123 = vunpack.c.l.b16 %v55
    %v124 = vunpack.c.l.b16 %v56
    %v125 = vunpack.c.l.b16 %v57
    %v126 = vunpack.c.l.b16 %v58
    %v127 = vunpack.c.l.b16 %v59
    %v128 = vunpack.c.l.b16 %v60
    %v129 = vunpack.c.l.b16 %v61
    %v130 = vunpack.c.l.b16 %v62
    %v131 = vunpack.c.l.b16 %v63
    %v132 = vunpack.c.l.b16 %v64
    %v133 = vunpack.c.l.b16 %v65
    %v134 = vunpack.c.l.b16 %v66
    %v135 = vunpack.c.l.b16 %v67
    %v136 = vunpack.c.l.b16 %v68
    %v137 = vunpack.c.l.b16 %v69
    %v138 = vunpack.c.l.b16 %v70
    %v139 = vunpack.c.l.b16 %v71
    %v140 = vunpack.c.l.b16 %v72
    %v141 = vunpack.c.l.b16 %v73
    %v142 = vunpack.c.l.b16 %v74
    %v143 = vunpack.c.l.b16 %v75
    %v144 = vunpack.c.l.b16 %v76
    %v145 = vunpack.c.l.b16 %v77
    %v146 = vunpack.c.l.b16 %v78
    %v147 = vunpack.c.l.b16 %v79
    %v148 = vunpack.c.l.b16 %v80
    %v149 = vunpack.c.l.b16 %v81
    %v150 = vunpack.c.l.b16 %v82
    %v151 = vunpack.c.l.b16 %v83
    %v152 = vunpack.c.l.b16 %v84
    %v153 = vunpack.c.l.b16 %v85
    %v154 = vunpack.c.l.b16 %v86
    %v155 = vpack.c.b16 %v124, %v123
    %v156 = vpack.c.b16 %v126, %v125
    %v157 = vpack.c.b16 %v128, %v127
    %v158 = vpack.c.b16 %v130, %v129
    %v159 = vpack.c.b16 %v132, %v131
    %v160 = vpack.c.b16 %v134, %v133
    %v161 = vpack.c.b16 %v136, %v135
    %v162 = vpack.c.b16 %v138, %v137
    %v163 = vpack.c.b16 %v140, %v139
    %v164 = vpack.c.b16 %v142, %v141
    %v165 = vpack.c.b16 %v144, %v143
    %v166 = vpack.c.b16 %v146, %v145
    %v167 = vpack.c.b16 %v148, %v147
    %v168 = vpack.c.b16 %v150, %v149
    %v169 = vpack.c.b16 %v152, %v151
    %v170 = vpack.c.b16 %v154, %v153
    %187 = vmatpush.bf16.msra.mxu0 %v162
    %188 = vmatpush.bf16.msra.mxu0 %v161
    %189 = vmatpush.bf16.msra.mxu0 %v160
    %190 = vmatpush.bf16.msra.mxu0 %v159
    %191 = vmatpush.bf16.msra.mxu0 %v158
    %192 = vmatpush.bf16.msra.mxu0 %v157
    %193 = vmatpush.bf16.msra.mxu0 %v156
    %194 = vmatpush.bf16.msra.mxu0 %v155
    %195 = vmatmul.bf16.gmra.mxu0 %v53
    %v196 = vpop.f32.mrf.mxu0
    %v197 = vadd.f32 %v89, %v196
    %v198 = vpop.f32.mrf.mxu0
    %199 = vdwg.mxu0
    %200 = vmatpush.bf16.msra.mxu0 %v170
    %201 = vmatpush.bf16.msra.mxu0 %v169
    %202 = vmatpush.bf16.msra.mxu0 %v168
    %203 = vmatpush.bf16.msra.mxu0 %v167
    %204 = vmatpush.bf16.msra.mxu0 %v166
    %205 = vmatpush.bf16.msra.mxu0 %v165
    %206 = vmatpush.bf16.msra.mxu0 %v164
    %207 = vmatpush.bf16.msra.mxu0 %v163
    %208 = vmatmul.bf16.gmra.mxu0 %v54
    %v209 = vpop.f32.mrf.mxu0
    %v210 = vadd.f32 %v197, %v209
    %v211 = vpop.f32.mrf.mxu0
    %212 = vdwg.mxu0
    %213 = vst [vmem:[#allocation7] sm:$0xff] %v210
    // Predicated region
    $region22: #{_lambda_.1} parent=1 // pred_check
      _
    $region23: #{_lambda_.1} parent=1 // pred_check_branch
      %215 = sbr.rel (0) target = $region25
    $region24: #{_lambda_.1} parent=1 // pred_region
      %217 = vsyncadd [#allocation4], 0
      %s219 = sshll.u32 [#allocation7], 4
      %s220 = int_to_ptr.vmem [resolvable:$true] %s219
      %s221 = sshll.u32 %s3, 4
      %s222 = int_to_ptr.hbm [resolvable:$true] %s221
      %224 = dma.vmem_to_hbm [thread:$0]  %s220, 128, %s222, [#allocation4]
    $region25: #{_lambda_.1} parent=1 // pred_fallthru
      _
    // Predicated region
    $region26: #{_lambda_.1} parent=1 // pred_check
      _
    $region27: #{_lambda_.1} parent=1 // pred_check_branch
      %226 = sbr.rel (0) target = $region29
    $region28: #{_lambda_.1} parent=1 // pred_region
      %228 = dma.done [#allocation4], 128
    $region29: #{_lambda_.1} parent=1 // pred_fallthru
      _
    %229 = vsyncpa [#allocation3], 1
    %230 = vsyncpa [#allocation6], 1
    %231 = vsyncpa [#allocation4], 1

</llo_original>
